<compile_context>
chip_gen: v6e
topology: v6e:2x2x1
jax: 0.10.0
libtpu: 0.0.40
codegen_flags: <defaults>
</compile_context>

<pallas_src>
import math

import jax
import jax.numpy as jnp
from jax.experimental import pallas as pl
from jax.experimental.pallas import tpu as pltpu


def _build_pe_table(embedding_size: int, max_len: int = 1024,
                    dtype=jnp.float32) -> jnp.ndarray:
    """Deterministic sinusoidal table, identical math to the PyTorch __init__."""
    assert embedding_size % 2 == 0, (
        "embedding_size must be even (same restriction as the PyTorch module)")
    position = jnp.arange(0, max_len, dtype=jnp.float32)[:, None]          # (max_len, 1)
    div_term = jnp.exp(
        jnp.arange(0, embedding_size, 2, dtype=jnp.float32)
        * (-math.log(10000.0) / embedding_size)
    )                                                                      # (emb/2,)
    pe = jnp.zeros((max_len, embedding_size), dtype=jnp.float32)
    pe = pe.at[:, 0::2].set(jnp.sin(position * div_term))
    pe = pe.at[:, 1::2].set(jnp.cos(position * div_term))
    return pe.astype(dtype)                                                # (max_len, emb)


def _add_pe_kernel(x_ref, pe_ref, o_ref):
    # x_ref:  (TB, T)  batch-tile x lane-tile of the flattened embedding
    # pe_ref: (1,  T)  matching PE tile (sublane-broadcast over the batch rows)
    # o_ref:  (TB, T)
    o_ref[...] = (x_ref[...] + pe_ref[...]).astype(o_ref.dtype)


def _choose_tiles(batch: int, flat: int, itemsize: int):
    """Pick (batch_tile, lane_tile) that are layout-legal and VMEM-friendly."""
    # Batch tile: dtype-aware sublane packing (f32: 8 rows/vreg, bf16: 16, int8: 32).
    packing = max(1, 4 // itemsize)
    tb_max = 8 * packing
    tb = batch if batch <= tb_max else tb_max
    # Lane tile: ~4 MiB per x block, multiple of 128, capped at full extent.
    target_bytes = 4 * 1024 * 1024
    t = max(128, (target_bytes // (tb * itemsize)) // 128 * 128)
    if t >= flat:
        t = flat                              # full extent is always legal
    return tb, t


def _vmem_limit_bytes(tb: int, t: int, itemsize: int) -> int:
    """Scoped-VMEM limit covering the double-buffered working set with headroom.

    Capped at 48 MiB so it never approaches v7x's 64 MiB physical VMEM; the
    floor covers compiler-internal scratch for small problems.
    """
    blk = tb * t * itemsize                   # one x (== one out) block
    pe_blk = t * itemsize                     # one pe block
    working = 2 * (2 * blk + pe_blk)          # x, out, pe each double-buffered
    return int(min(48 * 1024 * 1024, max(16 * 1024 * 1024, working + 8 * 1024 * 1024)))


def _add_pe_pallas(x2: jnp.ndarray, pe2: jnp.ndarray,
                   donate_input: bool = False) -> jnp.ndarray:
    """x2: (B, S*E) activations, pe2: (1, S*E) PE slab (same dtype)."""
    B, flat = x2.shape
    dtype = x2.dtype
    itemsize = jnp.dtype(dtype).itemsize

    tb, t = _choose_tiles(B, flat, itemsize)
    # Batch axis innermost -> the PE tile's block index is constant across it,
    # so Pallas keeps it resident instead of re-DMA'ing it per batch tile.
    grid = (pl.cdiv(flat, t), pl.cdiv(B, tb))

    return pl.pallas_call(
        _add_pe_kernel,
        out_shape=jax.ShapeDtypeStruct((B, flat), dtype),
        grid_spec=pltpu.PrefetchScalarGridSpec(
            num_scalar_prefetch=0,
            grid=grid,
            in_specs=[
                pl.BlockSpec((tb, t), lambda ti, bi: (bi, ti)),
                pl.BlockSpec((1, t), lambda ti, bi: (0, ti)),
            ],
            out_specs=pl.BlockSpec((tb, t), lambda ti, bi: (bi, ti)),
        ),
        compiler_params=pltpu.CompilerParams(
            # "arbitrary" on the inner batch axis steers v7x megacore sharding
            # onto the lane-tile axis (disjoint PE tiles per core, no duplicated
            # PE HBM traffic); no-op on single-TC v5e/v6e.
            dimension_semantics=("parallel", "arbitrary"),
            vmem_limit_bytes=_vmem_limit_bytes(tb, t, itemsize),
        ),
        input_output_aliases=({0: 0} if donate_input else {}),
    )(x2, pe2)


class PositionEmbedderX:
    """JAX/Pallas equivalent of the PyTorch PositionEmbedder_x module."""

    def __init__(self, embedding_size: int, max_len: int = 1024,
                 dtype=jnp.float32):
        self.embedding_size = int(embedding_size)
        self.max_len = int(max_len)
        self.dtype = jnp.dtype(dtype)
        # Build the table once, already in the activation dtype (no per-call cast).
        self.pe = _build_pe_table(self.embedding_size, self.max_len, self.dtype)
        self._flat_cache = {}                 # seq_len -> (1, S*E) slab

    def _pe_flat(self, seq_len: int) -> jnp.ndarray:
        slab = self._flat_cache.get(seq_len)
        if slab is None:
            # Contiguous slice + contiguous-collapse reshape: free, done once per S.
            slab = self.pe[:seq_len, :].reshape(1, seq_len * self.embedding_size)
            self._flat_cache[seq_len] = slab
        return slab

    def __call__(self, input_embedding: jnp.ndarray,
                 donate_input: bool = False) -> jnp.ndarray:
        B, S, E = input_embedding.shape
        if E != self.embedding_size:
            raise ValueError(f"embedding dim {E} != table dim {self.embedding_size}")
        if S > self.max_len:
            raise ValueError(f"seq_len={S} exceeds positional table max_len={self.max_len}")
        if input_embedding.dtype != self.dtype:
            input_embedding = input_embedding.astype(self.dtype)

        flat = S * E
        x2 = input_embedding.reshape(B, flat)   # contiguous collapse, free
        pe2 = self._pe_flat(S)
        out2 = _add_pe_pallas(x2, pe2, donate_input=donate_input)
        return out2.reshape(B, S, E)


# Functional convenience wrapper (kept for API compatibility with the previous version).
def position_embedder_x(input_embedding: jnp.ndarray,
                        pe_table: jnp.ndarray) -> jnp.ndarray:
    B, S, E = input_embedding.shape
    if S > pe_table.shape[0]:
        raise ValueError(f"seq_len={S} exceeds positional table max_len={pe_table.shape[0]}")
    dtype = input_embedding.dtype
    pe2 = pe_table[:S, :].astype(dtype).reshape(1, S * E)
    out2 = _add_pe_pallas(input_embedding.reshape(B, S * E), pe2)
    return out2.reshape(B, S, E)


if __name__ == "__main__":
    batch, seq_len, embedding_size = 2, 8, 32
    max_len = 1024

    key = jax.random.PRNGKey(0)
    x = jax.random.normal(key, (batch, seq_len, embedding_size), dtype=jnp.float32)

    embedder = PositionEmbedderX(embedding_size, max_len, dtype=jnp.float32)
    out = embedder(x)
    out = jax.block_until_ready(out)

    # Reference check in plain JAX (same math as the PyTorch forward).
    pe_ref = _build_pe_table(embedding_size, max_len, jnp.float32)
    ref = x + pe_ref[:seq_len, :][None, :, :]
    assert out.shape == (batch, seq_len, embedding_size)
    assert jnp.allclose(out, ref, atol=1e-6, rtol=1e-6)

    # Also exercise the functional wrapper path once.
    out2 = jax.block_until_ready(position_embedder_x(x, pe_ref))
    assert jnp.allclose(out2, ref, atol=1e-6, rtol=1e-6)

    print("KERNEL_OK")
</pallas_src>

<mosaic_0001>
module attributes {stable_mosaic.version = 11 : i64} {
  func.func @_add_pe_kernel(%arg0: i32, %arg1: i32, %arg2: memref<2x256xf32, #tpu.memory_space<vmem>>, %arg3: memref<1x256xf32, #tpu.memory_space<vmem>>, %arg4: memref<2x256xf32, #tpu.memory_space<vmem>>) attributes {dimension_semantics = [#tpu.dimension_semantics<parallel>, #tpu.dimension_semantics<arbitrary>], iteration_bounds = array<i64: 1, 1>, scalar_prefetch = 0 : i64, scratch_operands = 0 : i64, tpu.core_type = #tpu.core_type<tc>, window_params = [{transform_indices = @transform_0, window_bounds = array<i64: 2, 256>}, {transform_indices = @transform_1, window_bounds = array<i64: 1, 256>}, {transform_indices = @transform_2, window_bounds = array<i64: 2, 256>}]} {
    %c0 = arith.constant 0 : index
    %c0_0 = arith.constant 0 : index
    %0 = vector.load %arg2[%c0, %c0_0] : memref<2x256xf32, #tpu.memory_space<vmem>>, vector<2x256xf32>
    %c0_1 = arith.constant 0 : index
    %c0_2 = arith.constant 0 : index
    %1 = vector.load %arg3[%c0_1, %c0_2] : memref<1x256xf32, #tpu.memory_space<vmem>>, vector<1x256xf32>
    %2 = vector.broadcast %1 : vector<1x256xf32> to vector<2x256xf32>
    %3 = arith.addf %0, %2 : vector<2x256xf32>
    %c0_3 = arith.constant 0 : index
    %c0_4 = arith.constant 0 : index
    %4 = vector.load %arg4[%c0_3, %c0_4] : memref<2x256xf32, #tpu.memory_space<vmem>>, vector<2x256xf32>
    tpu.vector_store %arg4[%c0_3, %c0_4], %3 {strides = array<i32>} : memref<2x256xf32, #tpu.memory_space<vmem>>, vector<2x256xf32>,
    return
  }
  func.func @transform_0(%arg0: i32, %arg1: i32) -> (i32, i32) {
    %c0_i32 = arith.constant 0 : i32
    return %arg1, %arg0 : i32, i32
  }
  func.func @transform_1(%arg0: i32, %arg1: i32) -> (i32, i32) {
    %c0_i32 = arith.constant 0 : i32
    %c0_i32_0 = arith.constant 0 : i32
    return %c0_i32, %arg0 : i32, i32
  }
  func.func @transform_2(%arg0: i32, %arg1: i32) -> (i32, i32) {
    %c0_i32 = arith.constant 0 : i32
    return %arg1, %arg0 : i32, i32
  }
}

</mosaic_0001>

<llo_original>
// kernel: tpu_custom_call.1
$region0: #{tpu_custom_call.1}
  #allocation0 [shape = 'u32[]', space=smem, size = 0x4, offset = 0x4, fixed_abs, tag = 'smem constant byte address 0x4 - core index']
  #allocation1 [shape = 'u32[144,128]{1,0:T(1,128)}', space=vmem, size = 0x12000, scoped, tag = 'internal scratch']
  %s0 = inlined_call_operand.hbm [shape: f32[2,256], index: 0, kind: input, shape index: {}]
  %s1 = inlined_call_operand.hbm [shape: f32[1,256], index: 1, kind: input, shape index: {}]
  %s2 = inlined_call_operand.hbm [shape: f32[2,256], index: 2, kind: output, shape index: {}]
  %s3 = sld [smem:[#allocation0]]
  $region26: #{tpu_custom_call.1} parent=0
    _
  %s5 = ssub.s32 1, %s3
  %s6 = scalar_select 0, %s5, %s3
  $region1: #{tpu_custom_call.1} parent=0
    #allocation2 [shape = 'u8[2048]{0}', space=vmem, size = 0x800, scoped, tag = 'input window, operand 0, single buffered']
    #allocation3 [shape = 's32[1]{0}', space=sflag, size = 0x4, scoped, tag = 'scoped memory for tpu_custom_call.1']
    #allocation4 [shape = 's32[1]{0}', space=sflag, size = 0x4, scoped, tag = 'scoped memory for tpu_custom_call.1']
    #allocation5 [shape = 'u8[1024]{0}', space=vmem, size = 0x400, scoped, tag = 'input window, operand 1, single buffered']
    #allocation6 [shape = 's32[1]{0}', space=sflag, size = 0x4, scoped, tag = 'scoped memory for tpu_custom_call.1']
    #allocation7 [shape = 'u8[2048]{0}', space=vmem, size = 0x800, scoped, tag = 'output window, operand 0, single buffered']
    %7 = vsyncpa [#allocation3], 0
    %8 = vsyncpa [#allocation6], 0
    %9 = vsyncpa [#allocation4], 0
    // Predicated region
    $region2: #{tpu_custom_call.1} parent=1 // pred_check
      _
    $region3: #{tpu_custom_call.1} parent=1 // pred_check_branch
      %11 = sbr.rel (0) target = $region5
    $region4: #{tpu_custom_call.1} parent=1 // pred_region
      %s13 = ssub.s32 64, 64
      %14 = vsyncadd [#allocation3], %s13
      %s16 = sshll.u32 [#allocation2], 4
      %s17 = int_to_ptr.vmem [resolvable:$true] %s16
      %19 = dma.hbm_to_vmem [thread:$0]  %s0, 64, %s17, [#allocation3]
    $region5: #{tpu_custom_call.1} parent=1 // pred_fallthru
      _
    // Predicated region
    $region6: #{tpu_custom_call.1} parent=1 // pred_check
      _
    $region7: #{tpu_custom_call.1} parent=1 // pred_check_branch
      %21 = sbr.rel (0) target = $region9
    $region8: #{tpu_custom_call.1} parent=1 // pred_region
      %s23 = ssub.s32 32, 32
      %24 = vsyncadd [#allocation6], %s23
      %s26 = sshll.u32 [#allocation5], 4
      %s27 = int_to_ptr.vmem [resolvable:$true] %s26
      %29 = dma.hbm_to_vmem [thread:$0]  %s1, 32, %s27, [#allocation6]
    $region9: #{tpu_custom_call.1} parent=1 // pred_fallthru
      _
    // Predicated region
    $region10: #{tpu_custom_call.1} parent=1 // pred_check
      _
    $region11: #{tpu_custom_call.1} parent=1 // pred_check_branch
      %31 = sbr.rel (0) target = $region13
    $region12: #{tpu_custom_call.1} parent=1 // pred_region
      %32 = dma.done [#allocation3], 64
    $region13: #{tpu_custom_call.1} parent=1 // pred_fallthru
      _
    // Predicated region
    $region14: #{tpu_custom_call.1} parent=1 // pred_check
      _
    $region15: #{tpu_custom_call.1} parent=1 // pred_check_branch
      %34 = sbr.rel (0) target = $region17
    $region16: #{tpu_custom_call.1} parent=1 // pred_region
      %35 = dma.done [#allocation6], 32
    $region17: #{tpu_custom_call.1} parent=1 // pred_fallthru
      _
    %v36 = vld [vmem:[#allocation2] sm:$0xf]
    %v37 = vld [vmem:[#allocation5] sm:$0x3]
    %v39 = vlaneseq
    %v40 = vshrl.u32 %v39, 7
    %v41 = vsub.s32 0, %v40
    %v42 = vrot.slane %v37, %v41
    %v43 = vlaneseq
    %v44 = vshrl.u32 %v43, 7
    %v45 = vsub.s32 1, %v44
    %v46 = vrot.slane %v37, %v45
    %v47 = vcombine.low %v42, %v46
    %v49 = vunpack.c.l.s4 1983009808
    %v50 = vunpack.c.0.s8 %v49
    %v51 = vlaneseq
    %v52 = vshrl.u32 %v51, 7
    %v53 = vsub.s32 %v50, %v52
    %v54 = vrot.slane %v47, %v53
    %v56 = vadd.f32 %v36, %v54
    %57 = vst [vmem:[#allocation7] sm:$0xf] %v56
    // Predicated region
    $region18: #{tpu_custom_call.1} parent=1 // pred_check
      _
    $region19: #{tpu_custom_call.1} parent=1 // pred_check_branch
      %59 = sbr.rel (0) target = $region21
    $region20: #{tpu_custom_call.1} parent=1 // pred_region
      %s61 = ssub.s32 64, 64
      %62 = vsyncadd [#allocation4], %s61
      %s64 = sshll.u32 [#allocation7], 4
      %s65 = int_to_ptr.vmem [resolvable:$true] %s64
      %67 = dma.vmem_to_hbm [thread:$0]  %s65, 64, %s2, [#allocation4]
    $region21: #{tpu_custom_call.1} parent=1 // pred_fallthru
      _
    // Predicated region
    $region22: #{tpu_custom_call.1} parent=1 // pred_check
      _
    $region23: #{tpu_custom_call.1} parent=1 // pred_check_branch
      %69 = sbr.rel (0) target = $region25
    $region24: #{tpu_custom_call.1} parent=1 // pred_region
      %70 = dma.done [#allocation4], 64
    $region25: #{tpu_custom_call.1} parent=1 // pred_fallthru
      _
    %71 = vsyncpa [#allocation3], 1
    %72 = vsyncpa [#allocation6], 1
    %73 = vsyncpa [#allocation4], 1

</llo_original>
